<compile_context>
chip_gen: v7x
topology: tpu7x:2x2x1
jax: 0.10.0
libtpu: 0.0.40
codegen_flags: <defaults>
</compile_context>

<pallas_src>
import jax
import jax.numpy as jnp
from jax.experimental import pallas as pl
from jax.experimental.pallas import tpu as pltpu


# ----------------------------- packed-parameter layout -----------------------------

def _r8(n):
    return (n + 7) // 8 * 8


_VEC_NAMES = ("b1", "b2", "bgru", "ln1g", "ln1b", "ln2g", "ln2b",
              "ln3g", "ln3b", "ln0g", "ln0b", "bact")


def make_layout(input_dim, hidden, output_dim):
    """Row/col offsets of every parameter inside the single packed f32 buffer."""
    H, IN, A = hidden, input_dim, output_dim
    W = max(6 * H, IN)                       # packed lane width (widest row = fused GRU weight)
    off_w1 = 0
    off_w2 = _r8(off_w1 + IN)
    off_wgru = _r8(off_w2 + H)
    off_wact = _r8(off_wgru + 2 * H)
    off_vec = _r8(off_wact + H)
    rows = _r8(off_vec + len(_VEC_NAMES))
    vec_rows = {n: off_vec + k for k, n in enumerate(_VEC_NAMES)}
    return dict(H=H, IN=IN, A=A, W=W, rows=rows,
                off_w1=off_w1, off_w2=off_w2, off_wgru=off_wgru,
                off_wact=off_wact, vec=vec_rows)


def pack_params(params, layout):
    """Pack all parameters into one contiguous f32 buffer (done once at init)."""
    L = layout
    H = L["H"]
    buf = jnp.zeros((L["rows"], L["W"]), jnp.float32)

    def put(b, r0, arr):
        arr = jnp.asarray(arr, jnp.float32)
        return b.at[r0:r0 + arr.shape[0], 0:arr.shape[1]].set(arr)

    buf = put(buf, L["off_w1"], params["w1"])          # (IN, H)
    buf = put(buf, L["off_w2"], params["w2"])          # (H, H)
    # fused block-diagonal GRU weight: [x | h0] @ Wblk = [gi | gh]
    wgru = jnp.zeros((2 * H, 6 * H), jnp.float32)
    wgru = wgru.at[0:H, 0:3 * H].set(params["wih"])
    wgru = wgru.at[H:2 * H, 3 * H:6 * H].set(params["whh"])
    buf = put(buf, L["off_wgru"], wgru)                # (2H, 6H)
    buf = put(buf, L["off_wact"], params["wact"])      # (H, A)

    vec = L["vec"]
    buf = put(buf, vec["b1"], params["b1"])
    buf = put(buf, vec["b2"], params["b2"])
    buf = put(buf, vec["bgru"],
              jnp.concatenate([params["bih"], params["bhh"]], axis=-1))
    for n in ("ln1g", "ln1b", "ln2g", "ln2b", "ln3g", "ln3b", "ln0g", "ln0b", "bact"):
        buf = put(buf, vec[n], params[n])
    return buf


# ------------------------------------ kernel ------------------------------------

def _layernorm(x, g, b, eps=1e-5):
    # PyTorch LayerNorm: biased variance, eps inside rsqrt.
    mu = jnp.mean(x, axis=-1, keepdims=True)
    var = jnp.mean(jnp.square(x - mu), axis=-1, keepdims=True)
    return (x - mu) * jax.lax.rsqrt(var + eps) * g + b


def _make_kernel(layout, slab_width):
    L = layout
    H, IN, A = L["H"], L["IN"], L["A"]
    V = L["vec"]

    def row(p_ref, name, width):
        r = V[name]
        return p_ref[r:r + 1, 0:width]                 # static slice: (1, width)

    def kernel(x_ref, hxs_ref, mask_ref, avail_ref, p_ref, out_ref):
        # feature_norm
        x = _layernorm(x_ref[...], row(p_ref, "ln0g", IN), row(p_ref, "ln0b", IN))

        # fc1: Linear -> ReLU -> LayerNorm
        w1 = p_ref[L["off_w1"]:L["off_w1"] + IN, 0:H]
        x = jnp.dot(x, w1, preferred_element_type=jnp.float32) + row(p_ref, "b1", H)
        x = _layernorm(jnp.maximum(x, 0.0), row(p_ref, "ln1g", H), row(p_ref, "ln1b", H))

        # fc2: Linear -> ReLU -> LayerNorm
        w2 = p_ref[L["off_w2"]:L["off_w2"] + H, 0:H]
        x = jnp.dot(x, w2, preferred_element_type=jnp.float32) + row(p_ref, "b2", H)
        x = _layernorm(jnp.maximum(x, 0.0), row(p_ref, "ln2g", H), row(p_ref, "ln2b", H))

        # single-step GRU (seq_len = 1); both gate matmuls fused into one MXU pass.
        h0 = hxs_ref[...] * mask_ref[...]
        wgru = p_ref[L["off_wgru"]:L["off_wgru"] + 2 * H, 0:6 * H]
        g = jnp.dot(jnp.concatenate([x, h0], axis=-1), wgru,
                    preferred_element_type=jnp.float32) + row(p_ref, "bgru", 6 * H)
        # g = [gi_r gi_z gi_n | gh_r gh_z gh_n]
        r = jax.nn.sigmoid(g[:, 0:H] + g[:, 3 * H:4 * H])
        z = jax.nn.sigmoid(g[:, H:2 * H] + g[:, 4 * H:5 * H])
        n = jnp.tanh(g[:, 2 * H:3 * H] + r * g[:, 5 * H:6 * H])
        h = (1.0 - z) * n + z * h0

        # norm -> act
        y = _layernorm(h, row(p_ref, "ln3g", H), row(p_ref, "ln3b", H))
        wact = p_ref[L["off_wact"]:L["off_wact"] + H, 0:A]
        logits = jnp.dot(y, wact, preferred_element_type=jnp.float32) + row(p_ref, "bact", A)

        # available_actions masking: logits[avail == 0] = -1e10
        logits = jnp.where(avail_ref[...] == 0.0, jnp.float32(-1e10), logits)

        # onehot_from_logits: 1.0 wherever logits == row max (ties all kept, as in torch)
        action = (logits == jnp.max(logits, axis=-1, keepdims=True)).astype(jnp.float32)

        # Lane-dense single full-width store: [h_new | action | zero pad]
        pad = jnp.zeros((h.shape[0], slab_width - H - A), jnp.float32)
        out_ref[...] = jnp.concatenate([h, action, pad], axis=-1)

    return kernel


# ------------------------------------ wrapper ------------------------------------

def _pick_tb(n):
    if n % 8 != 0:
        return n                                   # single full block
    for tb in (1024, 512, 256, 128, 64, 32, 16, 8):
        if n % tb == 0:
            return tb
    return n


def rmappo_forward(x, hxs, mask, avail, packed_params, layout):
    N = x.shape[0]
    L = layout
    H, IN, A, W = L["H"], L["IN"], L["A"], L["W"]
    SLAB = ((H + A + 127) // 128) * 128            # lane-dense output slab width

    TB = _pick_tb(N)
    grid = (N // TB,)
    kernel = _make_kernel(layout, SLAB)

    flops = 2 * N * (IN * H + H * H + 2 * H * 6 * H + H * A)
    transcendentals = N * (3 * H + 4)              # sigmoid/tanh gates + 4 rsqrt per row
    bytes_accessed = 4 * (N * (IN + H + 1 + A + SLAB) + int(packed_params.size))

    slab = pl.pallas_call(
        kernel,
        out_shape=jax.ShapeDtypeStruct((N, SLAB), jnp.float32),
        grid=grid,
        in_specs=[
            pl.BlockSpec((TB, IN), lambda i: (i, 0)),
            pl.BlockSpec((TB, H), lambda i: (i, 0)),
            pl.BlockSpec((TB, 1), lambda i: (i, 0)),
            pl.BlockSpec((TB, A), lambda i: (i, 0)),
            # parameters: same block every grid step -> stays VMEM-resident (one DMA)
            pl.BlockSpec((L["rows"], W), lambda i: (0, 0)),
        ],
        out_specs=pl.BlockSpec((TB, SLAB), lambda i: (i, 0)),
        compiler_params=pltpu.CompilerParams(
            dimension_semantics=("parallel",)),
        cost_estimate=pl.CostEstimate(
            flops=flops, transcendentals=transcendentals,
            bytes_accessed=bytes_accessed),
    )(x, hxs, mask, avail, packed_params)

    h_new = slab[:, 0:H]
    action = slab[:, H:H + A]
    return action, h_new


# -------------------------------- init + reference --------------------------------

def init_params(key, input_dim, hidden, output_dim):
    ks = jax.random.split(key, 8)
    s = 0.1

    def nrm(k, shape):
        return jax.random.normal(k, shape, dtype=jnp.float32) * s

    H = hidden
    return {
        "ln0g": jnp.ones((1, input_dim), jnp.float32), "ln0b": jnp.zeros((1, input_dim), jnp.float32),
        "ln1g": jnp.ones((1, H), jnp.float32), "ln1b": jnp.zeros((1, H), jnp.float32),
        "ln2g": jnp.ones((1, H), jnp.float32), "ln2b": jnp.zeros((1, H), jnp.float32),
        "ln3g": jnp.ones((1, H), jnp.float32), "ln3b": jnp.zeros((1, H), jnp.float32),
        "w1": nrm(ks[0], (input_dim, H)), "b1": nrm(ks[1], (1, H)),
        "w2": nrm(ks[2], (H, H)), "b2": nrm(ks[3], (1, H)),
        # GRU weight_ih / weight_hh (3H, H) pre-transposed -> (H, 3H), gate order [r, z, n]
        "wih": nrm(ks[4], (H, 3 * H)), "whh": nrm(ks[5], (H, 3 * H)),
        "bih": jnp.full((1, 3 * H), 0.01, jnp.float32), "bhh": jnp.zeros((1, 3 * H), jnp.float32),
        "wact": nrm(ks[7], (H, output_dim)), "bact": jnp.zeros((1, output_dim), jnp.float32),
    }


def reference_forward(x, hxs, mask, avail, p):
    """Pure-JAX reference mirroring the PyTorch module."""
    H = hxs.shape[-1]
    v = _layernorm(x, p["ln0g"], p["ln0b"])
    v = _layernorm(jnp.maximum(v @ p["w1"] + p["b1"], 0.0), p["ln1g"], p["ln1b"])
    v = _layernorm(jnp.maximum(v @ p["w2"] + p["b2"], 0.0), p["ln2g"], p["ln2b"])
    h0 = hxs * mask
    gi = v @ p["wih"] + p["bih"]
    gh = h0 @ p["whh"] + p["bhh"]
    r = jax.nn.sigmoid(gi[:, :H] + gh[:, :H])
    z = jax.nn.sigmoid(gi[:, H:2 * H] + gh[:, H:2 * H])
    n = jnp.tanh(gi[:, 2 * H:] + r * gh[:, 2 * H:])
    h = (1.0 - z) * n + z * h0
    y = _layernorm(h, p["ln3g"], p["ln3b"])
    logits = y @ p["wact"] + p["bact"]
    logits = jnp.where(avail == 0.0, jnp.float32(-1e10), logits)
    act = (logits == jnp.max(logits, axis=-1, keepdims=True)).astype(jnp.float32)
    return act, h


# ------------------------------------ main ------------------------------------

if __name__ == "__main__":
    INPUT_DIM, HIDDEN, OUTPUT_DIM, BATCH = 48, 32, 16, 8

    key = jax.random.PRNGKey(0)
    k_x, k_h, k_m, k_a, k_p = jax.random.split(key, 5)

    x = jax.random.normal(k_x, (BATCH, INPUT_DIM), dtype=jnp.float32)
    hxs = jax.random.normal(k_h, (BATCH, HIDDEN), dtype=jnp.float32)
    mask = (jax.random.uniform(k_m, (BATCH, 1)) > 0.3).astype(jnp.float32)
    avail = (jax.random.uniform(k_a, (BATCH, OUTPUT_DIM)) > 0.4).astype(jnp.float32)
    avail = avail.at[:, 0].set(1.0)   # at least one available action per row

    params = init_params(k_p, INPUT_DIM, HIDDEN, OUTPUT_DIM)
    layout = make_layout(INPUT_DIM, HIDDEN, OUTPUT_DIM)
    packed = pack_params(params, layout)      # one-time weight preprocessing

    action, h_new = rmappo_forward(x, hxs, mask, avail, packed, layout)
    jax.block_until_ready((action, h_new))

    assert action.shape == (BATCH, OUTPUT_DIM) and h_new.shape == (BATCH, HIDDEN)
    # each row of `action` must contain at least one 1.0 (argmax one-hot)
    assert bool(jnp.all(jnp.sum(action, axis=-1) >= 1.0))

    # correctness vs pure-JAX reference
    act_ref, h_ref = reference_forward(x, hxs, mask, avail, params)
    assert bool(jnp.allclose(h_new, h_ref, atol=1e-4, rtol=1e-4))
    assert bool(jnp.all(jnp.argmax(action, axis=-1) == jnp.argmax(act_ref, axis=-1)))

    print("KERNEL_OK")
</pallas_src>

<mosaic_0001>
module attributes {stable_mosaic.version = 11 : i64} {
  func.func @kernel(%arg0: i32, %arg1: memref<8x48xf32, #tpu.memory_space<vmem>>, %arg2: memref<8x32xf32, #tpu.memory_space<vmem>>, %arg3: memref<8x1xf32, #tpu.memory_space<vmem>>, %arg4: memref<8x16xf32, #tpu.memory_space<vmem>>, %arg5: memref<192x192xf32, #tpu.memory_space<vmem>>, %arg6: memref<8x128xf32, #tpu.memory_space<vmem>>) attributes {dimension_semantics = [#tpu.dimension_semantics<parallel>], iteration_bounds = array<i64: 1>, scalar_prefetch = 0 : i64, scratch_operands = 0 : i64, tpu.core_type = #tpu.core_type<tc>, window_params = [{transform_indices = @transform_0, window_bounds = array<i64: 8, 48>}, {transform_indices = @transform_1, window_bounds = array<i64: 8, 32>}, {transform_indices = @transform_2, window_bounds = array<i64: 8, 1>}, {transform_indices = @transform_3, window_bounds = array<i64: 8, 16>}, {pipeline_mode = #tpu.pipeline_mode<synchronous>, transform_indices = @transform_4, window_bounds = array<i64: 192, 192>}, {transform_indices = @transform_5, window_bounds = array<i64: 8, 128>}]} {
    %c0 = arith.constant 0 : index
    %c0_0 = arith.constant 0 : index
    %0 = vector.load %arg1[%c0, %c0_0] : memref<8x48xf32, #tpu.memory_space<vmem>>, vector<8x48xf32>
    %c185 = arith.constant 185 : index
    %c0_1 = arith.constant 0 : index
    %1 = vector.load %arg5[%c185, %c0_1] : memref<192x192xf32, #tpu.memory_space<vmem>>, vector<1x48xf32>
    %c186 = arith.constant 186 : index
    %c0_2 = arith.constant 0 : index
    %2 = vector.load %arg5[%c186, %c0_2] : memref<192x192xf32, #tpu.memory_space<vmem>>, vector<1x48xf32>
    %cst = arith.constant dense<0.000000e+00> : vector<8xf32>
    %3 = vector.multi_reduction <add>, %0, %cst [1] : vector<8x48xf32> to vector<8xf32>
    %4 = vector.shape_cast %3 : vector<8xf32> to vector<8x1xf32>
    %cst_3 = arith.constant 4.800000e+01 : f32
    %5 = vector.broadcast %cst_3 : f32 to vector<8x1xf32>
    %6 = arith.divf %4, %5 : vector<8x1xf32>
    %7 = vector.broadcast %6 : vector<8x1xf32> to vector<8x48xf32>
    %8 = arith.subf %0, %7 : vector<8x48xf32>
    %9 = arith.mulf %8, %8 : vector<8x48xf32>
    %cst_4 = arith.constant dense<0.000000e+00> : vector<8xf32>
    %10 = vector.multi_reduction <add>, %9, %cst_4 [1] : vector<8x48xf32> to vector<8xf32>
    %11 = vector.shape_cast %10 : vector<8xf32> to vector<8x1xf32>
    %cst_5 = arith.constant 4.800000e+01 : f32
    %12 = vector.broadcast %cst_5 : f32 to vector<8x1xf32>
    %13 = arith.divf %11, %12 : vector<8x1xf32>
    %14 = vector.broadcast %6 : vector<8x1xf32> to vector<8x48xf32>
    %15 = arith.subf %0, %14 : vector<8x48xf32>
    %cst_6 = arith.constant 9.99999974E-6 : f32
    %16 = vector.broadcast %cst_6 : f32 to vector<8x1xf32>
    %17 = arith.addf %13, %16 : vector<8x1xf32>
    %18 = math.rsqrt %17 : vector<8x1xf32>
    %19 = vector.broadcast %18 : vector<8x1xf32> to vector<8x48xf32>
    %20 = arith.mulf %15, %19 : vector<8x48xf32>
    %21 = vector.broadcast %1 : vector<1x48xf32> to vector<8x48xf32>
    %22 = arith.mulf %20, %21 : vector<8x48xf32>
    %23 = vector.broadcast %2 : vector<1x48xf32> to vector<8x48xf32>
    %24 = arith.addf %22, %23 : vector<8x48xf32>
    %c0_7 = arith.constant 0 : index
    %c0_8 = arith.constant 0 : index
    %25 = vector.load %arg5[%c0_7, %c0_8] : memref<192x192xf32, #tpu.memory_space<vmem>>, vector<48x32xf32>
    %cst_9 = arith.constant dense<0.000000e+00> : vector<8x32xf32>
    %26 = tpu.matmul %24, %25, %cst_9 {dimension_numbers = #tpu.dot_dimension_numbers<[1], [0], [0], [1], [0, 0, 1, 1], [], []>} : vector<8x48xf32>, vector<48x32xf32>, vector<8x32xf32> -> vector<8x32xf32>
    %c176 = arith.constant 176 : index
    %c0_10 = arith.constant 0 : index
    %27 = vector.load %arg5[%c176, %c0_10] : memref<192x192xf32, #tpu.memory_space<vmem>>, vector<1x32xf32>
    %28 = vector.broadcast %27 : vector<1x32xf32> to vector<8x32xf32>
    %29 = arith.addf %26, %28 : vector<8x32xf32>
    %cst_11 = arith.constant 0.000000e+00 : f32
    %30 = vector.broadcast %cst_11 : f32 to vector<8x32xf32>
    %31 = arith.maximumf %29, %30 : vector<8x32xf32>
    %c179 = arith.constant 179 : index
    %c0_12 = arith.constant 0 : index
    %32 = vector.load %arg5[%c179, %c0_12] : memref<192x192xf32, #tpu.memory_space<vmem>>, vector<1x32xf32>
    %c180 = arith.constant 180 : index
    %c0_13 = arith.constant 0 : index
    %33 = vector.load %arg5[%c180, %c0_13] : memref<192x192xf32, #tpu.memory_space<vmem>>, vector<1x32xf32>
    %cst_14 = arith.constant dense<0.000000e+00> : vector<8xf32>
    %34 = vector.multi_reduction <add>, %31, %cst_14 [1] : vector<8x32xf32> to vector<8xf32>
    %35 = vector.shape_cast %34 : vector<8xf32> to vector<8x1xf32>
    %cst_15 = arith.constant 3.200000e+01 : f32
    %36 = vector.broadcast %cst_15 : f32 to vector<8x1xf32>
    %37 = arith.divf %35, %36 : vector<8x1xf32>
    %38 = vector.broadcast %37 : vector<8x1xf32> to vector<8x32xf32>
    %39 = arith.subf %31, %38 : vector<8x32xf32>
    %40 = arith.mulf %39, %39 : vector<8x32xf32>
    %cst_16 = arith.constant dense<0.000000e+00> : vector<8xf32>
    %41 = vector.multi_reduction <add>, %40, %cst_16 [1] : vector<8x32xf32> to vector<8xf32>
    %42 = vector.shape_cast %41 : vector<8xf32> to vector<8x1xf32>
    %cst_17 = arith.constant 3.200000e+01 : f32
    %43 = vector.broadcast %cst_17 : f32 to vector<8x1xf32>
    %44 = arith.divf %42, %43 : vector<8x1xf32>
    %45 = vector.broadcast %37 : vector<8x1xf32> to vector<8x32xf32>
    %46 = arith.subf %31, %45 : vector<8x32xf32>
    %cst_18 = arith.constant 9.99999974E-6 : f32
    %47 = vector.broadcast %cst_18 : f32 to vector<8x1xf32>
    %48 = arith.addf %44, %47 : vector<8x1xf32>
    %49 = math.rsqrt %48 : vector<8x1xf32>
    %50 = vector.broadcast %49 : vector<8x1xf32> to vector<8x32xf32>
    %51 = arith.mulf %46, %50 : vector<8x32xf32>
    %52 = vector.broadcast %32 : vector<1x32xf32> to vector<8x32xf32>
    %53 = arith.mulf %51, %52 : vector<8x32xf32>
    %54 = vector.broadcast %33 : vector<1x32xf32> to vector<8x32xf32>
    %55 = arith.addf %53, %54 : vector<8x32xf32>
    %c48 = arith.constant 48 : index
    %c0_19 = arith.constant 0 : index
    %56 = vector.load %arg5[%c48, %c0_19] : memref<192x192xf32, #tpu.memory_space<vmem>>, vector<32x32xf32>
    %cst_20 = arith.constant dense<0.000000e+00> : vector<8x32xf32>
    %57 = tpu.matmul %55, %56, %cst_20 {dimension_numbers = #tpu.dot_dimension_numbers<[1], [0], [0], [1], [0, 0, 1, 1], [], []>} : vector<8x32xf32>, vector<32x32xf32>, vector<8x32xf32> -> vector<8x32xf32>
    %c177 = arith.constant 177 : index
    %c0_21 = arith.constant 0 : index
    %58 = vector.load %arg5[%c177, %c0_21] : memref<192x192xf32, #tpu.memory_space<vmem>>, vector<1x32xf32>
    %59 = vector.broadcast %58 : vector<1x32xf32> to vector<8x32xf32>
    %60 = arith.addf %57, %59 : vector<8x32xf32>
    %cst_22 = arith.constant 0.000000e+00 : f32
    %61 = vector.broadcast %cst_22 : f32 to vector<8x32xf32>
    %62 = arith.maximumf %60, %61 : vector<8x32xf32>
    %c181 = arith.constant 181 : index
    %c0_23 = arith.constant 0 : index
    %63 = vector.load %arg5[%c181, %c0_23] : memref<192x192xf32, #tpu.memory_space<vmem>>, vector<1x32xf32>
    %c182 = arith.constant 182 : index
    %c0_24 = arith.constant 0 : index
    %64 = vector.load %arg5[%c182, %c0_24] : memref<192x192xf32, #tpu.memory_space<vmem>>, vector<1x32xf32>
    %cst_25 = arith.constant dense<0.000000e+00> : vector<8xf32>
    %65 = vector.multi_reduction <add>, %62, %cst_25 [1] : vector<8x32xf32> to vector<8xf32>
    %66 = vector.shape_cast %65 : vector<8xf32> to vector<8x1xf32>
    %cst_26 = arith.constant 3.200000e+01 : f32
    %67 = vector.broadcast %cst_26 : f32 to vector<8x1xf32>
    %68 = arith.divf %66, %67 : vector<8x1xf32>
    %69 = vector.broadcast %68 : vector<8x1xf32> to vector<8x32xf32>
    %70 = arith.subf %62, %69 : vector<8x32xf32>
    %71 = arith.mulf %70, %70 : vector<8x32xf32>
    %cst_27 = arith.constant dense<0.000000e+00> : vector<8xf32>
    %72 = vector.multi_reduction <add>, %71, %cst_27 [1] : vector<8x32xf32> to vector<8xf32>
    %73 = vector.shape_cast %72 : vector<8xf32> to vector<8x1xf32>
    %cst_28 = arith.constant 3.200000e+01 : f32
    %74 = vector.broadcast %cst_28 : f32 to vector<8x1xf32>
    %75 = arith.divf %73, %74 : vector<8x1xf32>
    %76 = vector.broadcast %68 : vector<8x1xf32> to vector<8x32xf32>
    %77 = arith.subf %62, %76 : vector<8x32xf32>
    %cst_29 = arith.constant 9.99999974E-6 : f32
    %78 = vector.broadcast %cst_29 : f32 to vector<8x1xf32>
    %79 = arith.addf %75, %78 : vector<8x1xf32>
    %80 = math.rsqrt %79 : vector<8x1xf32>
    %81 = vector.broadcast %80 : vector<8x1xf32> to vector<8x32xf32>
    %82 = arith.mulf %77, %81 : vector<8x32xf32>
    %83 = vector.broadcast %63 : vector<1x32xf32> to vector<8x32xf32>
    %84 = arith.mulf %82, %83 : vector<8x32xf32>
    %85 = vector.broadcast %64 : vector<1x32xf32> to vector<8x32xf32>
    %86 = arith.addf %84, %85 : vector<8x32xf32>
    %c0_30 = arith.constant 0 : index
    %c0_31 = arith.constant 0 : index
    %87 = vector.load %arg2[%c0_30, %c0_31] : memref<8x32xf32, #tpu.memory_space<vmem>>, vector<8x32xf32>
    %c0_32 = arith.constant 0 : index
    %c0_33 = arith.constant 0 : index
    %88 = vector.load %arg3[%c0_32, %c0_33] : memref<8x1xf32, #tpu.memory_space<vmem>>, vector<8x1xf32>
    %89 = vector.broadcast %88 : vector<8x1xf32> to vector<8x32xf32>
    %90 = arith.mulf %87, %89 : vector<8x32xf32>
    %c80 = arith.constant 80 : index
    %c0_34 = arith.constant 0 : index
    %91 = vector.load %arg5[%c80, %c0_34] : memref<192x192xf32, #tpu.memory_space<vmem>>, vector<64x192xf32>
    %92 = tpu.concatenate %86, %90 in 1 : vector<8x32xf32>, vector<8x32xf32> -> vector<8x64xf32>
    %cst_35 = arith.constant dense<0.000000e+00> : vector<8x192xf32>
    %93 = tpu.matmul %92, %91, %cst_35 {dimension_numbers = #tpu.dot_dimension_numbers<[1], [0], [0], [1], [0, 0, 1, 1], [], []>} : vector<8x64xf32>, vector<64x192xf32>, vector<8x192xf32> -> vector<8x192xf32>
    %c178 = arith.constant 178 : index
    %c0_36 = arith.constant 0 : index
    %94 = vector.load %arg5[%c178, %c0_36] : memref<192x192xf32, #tpu.memory_space<vmem>>, vector<1x192xf32>
    %95 = vector.broadcast %94 : vector<1x192xf32> to vector<8x192xf32>
    %96 = arith.addf %93, %95 : vector<8x192xf32>
    %97 = vector.extract_strided_slice %96 {offsets = [0, 0], sizes = [8, 32], strides = [1, 1]} : vector<8x192xf32> to vector<8x32xf32>
    %98 = vector.extract_strided_slice %96 {offsets = [0, 96], sizes = [8, 32], strides = [1, 1]} : vector<8x192xf32> to vector<8x32xf32>
    %99 = arith.addf %97, %98 : vector<8x32xf32>
    %100 = arith.negf %99 : vector<8x32xf32>
    %101 = math.exp %100 : vector<8x32xf32>
    %cst_37 = arith.constant 1.000000e+00 : f32
    %102 = vector.broadcast %cst_37 : f32 to vector<8x32xf32>
    %103 = arith.addf %102, %101 : vector<8x32xf32>
    %104 = arith.divf %102, %103 : vector<8x32xf32>
    %105 = vector.extract_strided_slice %96 {offsets = [0, 32], sizes = [8, 32], strides = [1, 1]} : vector<8x192xf32> to vector<8x32xf32>
    %106 = vector.extract_strided_slice %96 {offsets = [0, 128], sizes = [8, 32], strides = [1, 1]} : vector<8x192xf32> to vector<8x32xf32>
    %107 = arith.addf %105, %106 : vector<8x32xf32>
    %108 = arith.negf %107 : vector<8x32xf32>
    %109 = math.exp %108 : vector<8x32xf32>
    %cst_38 = arith.constant 1.000000e+00 : f32
    %110 = vector.broadcast %cst_38 : f32 to vector<8x32xf32>
    %111 = arith.addf %110, %109 : vector<8x32xf32>
    %112 = arith.divf %110, %111 : vector<8x32xf32>
    %113 = vector.extract_strided_slice %96 {offsets = [0, 64], sizes = [8, 32], strides = [1, 1]} : vector<8x192xf32> to vector<8x32xf32>
    %114 = vector.extract_strided_slice %96 {offsets = [0, 160], sizes = [8, 32], strides = [1, 1]} : vector<8x192xf32> to vector<8x32xf32>
    %115 = arith.mulf %104, %114 : vector<8x32xf32>
    %116 = arith.addf %113, %115 : vector<8x32xf32>
    %117 = math.tanh %116 : vector<8x32xf32>
    %cst_39 = arith.constant 1.000000e+00 : f32
    %118 = vector.broadcast %cst_39 : f32 to vector<8x32xf32>
    %119 = arith.subf %118, %112 : vector<8x32xf32>
    %120 = arith.mulf %119, %117 : vector<8x32xf32>
    %121 = arith.mulf %112, %90 : vector<8x32xf32>
    %122 = arith.addf %120, %121 : vector<8x32xf32>
    %c183 = arith.constant 183 : index
    %c0_40 = arith.constant 0 : index
    %123 = vector.load %arg5[%c183, %c0_40] : memref<192x192xf32, #tpu.memory_space<vmem>>, vector<1x32xf32>
    %c184 = arith.constant 184 : index
    %c0_41 = arith.constant 0 : index
    %124 = vector.load %arg5[%c184, %c0_41] : memref<192x192xf32, #tpu.memory_space<vmem>>, vector<1x32xf32>
    %cst_42 = arith.constant dense<0.000000e+00> : vector<8xf32>
    %125 = vector.multi_reduction <add>, %122, %cst_42 [1] : vector<8x32xf32> to vector<8xf32>
    %126 = vector.shape_cast %125 : vector<8xf32> to vector<8x1xf32>
    %cst_43 = arith.constant 3.200000e+01 : f32
    %127 = vector.broadcast %cst_43 : f32 to vector<8x1xf32>
    %128 = arith.divf %126, %127 : vector<8x1xf32>
    %129 = vector.broadcast %128 : vector<8x1xf32> to vector<8x32xf32>
    %130 = arith.subf %122, %129 : vector<8x32xf32>
    %131 = arith.mulf %130, %130 : vector<8x32xf32>
    %cst_44 = arith.constant dense<0.000000e+00> : vector<8xf32>
    %132 = vector.multi_reduction <add>, %131, %cst_44 [1] : vector<8x32xf32> to vector<8xf32>
    %133 = vector.shape_cast %132 : vector<8xf32> to vector<8x1xf32>
    %cst_45 = arith.constant 3.200000e+01 : f32
    %134 = vector.broadcast %cst_45 : f32 to vector<8x1xf32>
    %135 = arith.divf %133, %134 : vector<8x1xf32>
    %136 = vector.broadcast %128 : vector<8x1xf32> to vector<8x32xf32>
    %137 = arith.subf %122, %136 : vector<8x32xf32>
    %cst_46 = arith.constant 9.99999974E-6 : f32
    %138 = vector.broadcast %cst_46 : f32 to vector<8x1xf32>
    %139 = arith.addf %135, %138 : vector<8x1xf32>
    %140 = math.rsqrt %139 : vector<8x1xf32>
    %141 = vector.broadcast %140 : vector<8x1xf32> to vector<8x32xf32>
    %142 = arith.mulf %137, %141 : vector<8x32xf32>
    %143 = vector.broadcast %123 : vector<1x32xf32> to vector<8x32xf32>
    %144 = arith.mulf %142, %143 : vector<8x32xf32>
    %145 = vector.broadcast %124 : vector<1x32xf32> to vector<8x32xf32>
    %146 = arith.addf %144, %145 : vector<8x32xf32>
    %c144 = arith.constant 144 : index
    %c0_47 = arith.constant 0 : index
    %147 = vector.load %arg5[%c144, %c0_47] : memref<192x192xf32, #tpu.memory_space<vmem>>, vector<32x16xf32>
    %cst_48 = arith.constant dense<0.000000e+00> : vector<8x16xf32>
    %148 = tpu.matmul %146, %147, %cst_48 {dimension_numbers = #tpu.dot_dimension_numbers<[1], [0], [0], [1], [0, 0, 1, 1], [], []>} : vector<8x32xf32>, vector<32x16xf32>, vector<8x16xf32> -> vector<8x16xf32>
    %c187 = arith.constant 187 : index
    %c0_49 = arith.constant 0 : index
    %149 = vector.load %arg5[%c187, %c0_49] : memref<192x192xf32, #tpu.memory_space<vmem>>, vector<1x16xf32>
    %150 = vector.broadcast %149 : vector<1x16xf32> to vector<8x16xf32>
    %151 = arith.addf %148, %150 : vector<8x16xf32>
    %c0_50 = arith.constant 0 : index
    %c0_51 = arith.constant 0 : index
    %152 = vector.load %arg4[%c0_50, %c0_51] : memref<8x16xf32, #tpu.memory_space<vmem>>, vector<8x16xf32>
    %cst_52 = arith.constant 0.000000e+00 : f32
    %153 = vector.broadcast %cst_52 : f32 to vector<8x16xf32>
    %154 = arith.cmpf oeq, %152, %153 : vector<8x16xf32>
    %cst_53 = arith.constant -1.000000e+10 : f32
    %155 = vector.broadcast %cst_53 : f32 to vector<8x16xf32>
    %156 = arith.select %154, %155, %151 : vector<8x16xi1>, vector<8x16xf32>
    %cst_54 = arith.constant dense<0xFF800000> : vector<8xf32>
    %157 = vector.multi_reduction <maximumf>, %156, %cst_54 [1] : vector<8x16xf32> to vector<8xf32>
    %158 = vector.shape_cast %157 : vector<8xf32> to vector<8x1xf32>
    %159 = vector.broadcast %158 : vector<8x1xf32> to vector<8x16xf32>
    %160 = arith.cmpf oeq, %156, %159 : vector<8x16xf32>
    %161 = arith.extui %160 : vector<8x16xi1> to vector<8x16xi32>
    %162 = arith.sitofp %161 : vector<8x16xi32> to vector<8x16xf32>
    %cst_55 = arith.constant 0.000000e+00 : f32
    %163 = vector.broadcast %cst_55 : f32 to vector<8x80xf32>
    %164 = tpu.concatenate %122, %162, %163 in 1 : vector<8x32xf32>, vector<8x16xf32>, vector<8x80xf32> -> vector<8x128xf32>
    %c0_56 = arith.constant 0 : index
    %c0_57 = arith.constant 0 : index
    %165 = vector.load %arg6[%c0_56, %c0_57] : memref<8x128xf32, #tpu.memory_space<vmem>>, vector<8x128xf32>
    tpu.vector_store %arg6[%c0_56, %c0_57], %164 {strides = array<i32>} : memref<8x128xf32, #tpu.memory_space<vmem>>, vector<8x128xf32>,
    return
  }
  func.func @transform_0(%arg0: i32) -> (i32, i32) {
    %c0_i32 = arith.constant 0 : i32
    %c0_i32_0 = arith.constant 0 : i32
    return %arg0, %c0_i32 : i32, i32
  }
  func.func @transform_1(%arg0: i32) -> (i32, i32) {
    %c0_i32 = arith.constant 0 : i32
    %c0_i32_0 = arith.constant 0 : i32
    return %arg0, %c0_i32 : i32, i32
  }
  func.func @transform_2(%arg0: i32) -> (i32, i32) {
    %c0_i32 = arith.constant 0 : i32
    %c0_i32_0 = arith.constant 0 : i32
    return %arg0, %c0_i32 : i32, i32
  }
  func.func @transform_3(%arg0: i32) -> (i32, i32) {
    %c0_i32 = arith.constant 0 : i32
    %c0_i32_0 = arith.constant 0 : i32
    return %arg0, %c0_i32 : i32, i32
  }
  func.func @transform_4(%arg0: i32) -> (i32, i32) {
    %c0_i32 = arith.constant 0 : i32
    %c0_i32_0 = arith.constant 0 : i32
    %c0_i32_1 = arith.constant 0 : i32
    return %c0_i32, %c0_i32_0 : i32, i32
  }
  func.func @transform_5(%arg0: i32) -> (i32, i32) {
    %c0_i32 = arith.constant 0 : i32
    %c0_i32_0 = arith.constant 0 : i32
    return %arg0, %c0_i32 : i32, i32
  }
}

</mosaic_0001>

<llo_original>
// kernel: tpu_custom_call.1
$region0: #{tpu_custom_call.1}
  #allocation0 [shape = 'u32[]', space=smem, size = 0x4, offset = 0x4, fixed_abs, tag = 'smem constant byte address 0x4 - core index']
  #allocation1 [shape = 'u32[144,128]{1,0:T(1,128)}', space=vmem, size = 0x12000, scoped, tag = 'internal scratch']
  %s0 = inlined_call_operand.vmem [shape: f32[8,48], index: 0, kind: input, shape index: {}]
  %s1 = inlined_call_operand.hbm [shape: f32[8,32], index: 1, kind: input, shape index: {}]
  %s2 = inlined_call_operand.vmem [shape: f32[8,1], index: 2, kind: input, shape index: {}]
  %s3 = inlined_call_operand.vmem [shape: f32[8,16], index: 3, kind: input, shape index: {}]
  %s4 = inlined_call_operand.hbm [shape: f32[192,192], index: 4, kind: input, shape index: {}]
  %s5 = inlined_call_operand.hbm [shape: f32[8,128], index: 5, kind: output, shape index: {}]
  %s6 = sld [smem:[#allocation0]]
  $region38: #{tpu_custom_call.1} parent=0
    _
  %s8 = ssub.s32 1, %s6
  %s9 = scalar_select 0, %s8, %s6
  $region1: #{tpu_custom_call.1} parent=0
    #allocation2 [shape = 'u8[4096]{0}', space=vmem, size = 0x1000, scoped, tag = 'input window, operand 1, single buffered']
    #allocation3 [shape = 's32[1]{0}', space=sflag, size = 0x4, scoped, tag = 'scoped memory for tpu_custom_call.1']
    #allocation4 [shape = 's32[1]{0}', space=sflag, size = 0x4, scoped, tag = 'scoped memory for tpu_custom_call.1']
    #allocation5 [shape = 'u8[196608]{0}', space=vmem, size = 0x30000, scoped, tag = 'input window, operand 4, single buffered']
    #allocation6 [shape = 's32[1]{0}', space=sflag, size = 0x4, scoped, tag = 'scoped memory for tpu_custom_call.1']
    #allocation7 [shape = 'u8[4096]{0}', space=vmem, size = 0x1000, scoped, tag = 'output window, operand 0, single buffered']
    %10 = vsyncpa [#allocation3], 0
    %11 = vsyncpa [#allocation6], 0
    %12 = vsyncpa [#allocation4], 0
    // Predicated region
    $region2: #{tpu_custom_call.1} parent=1 // pred_check
      _
    $region3: #{tpu_custom_call.1} parent=1 // pred_check_branch
      %14 = sbr.rel (0) target = $region5
    $region4: #{tpu_custom_call.1} parent=1 // pred_region
      _
    $region5: #{tpu_custom_call.1} parent=1 // pred_fallthru
      _
    // Predicated region
    $region6: #{tpu_custom_call.1} parent=1 // pred_check
      _
    $region7: #{tpu_custom_call.1} parent=1 // pred_check_branch
      %16 = sbr.rel (0) target = $region9
    $region8: #{tpu_custom_call.1} parent=1 // pred_region
      %s18 = ssub.s32 128, 128
      %19 = vsyncadd [#allocation3], %s18
      %s21 = sshll.u32 [#allocation2], 4
      %s22 = int_to_ptr.vmem [resolvable:$true] %s21
      %24 = dma.hbm_to_vmem [thread:$0]  %s1, 128, %s22, [#allocation3]
    $region9: #{tpu_custom_call.1} parent=1 // pred_fallthru
      _
    // Predicated region
    $region10: #{tpu_custom_call.1} parent=1 // pred_check
      _
    $region11: #{tpu_custom_call.1} parent=1 // pred_check_branch
      %26 = sbr.rel (0) target = $region13
    $region12: #{tpu_custom_call.1} parent=1 // pred_region
      _
    $region13: #{tpu_custom_call.1} parent=1 // pred_fallthru
      _
    // Predicated region
    $region14: #{tpu_custom_call.1} parent=1 // pred_check
      _
    $region15: #{tpu_custom_call.1} parent=1 // pred_check_branch
      %28 = sbr.rel (0) target = $region17
    $region16: #{tpu_custom_call.1} parent=1 // pred_region
      _
    $region17: #{tpu_custom_call.1} parent=1 // pred_fallthru
      _
    // Predicated region
    $region18: #{tpu_custom_call.1} parent=1 // pred_check
      _
    $region19: #{tpu_custom_call.1} parent=1 // pred_check_branch
      %30 = sbr.rel (0) target = $region21
    $region20: #{tpu_custom_call.1} parent=1 // pred_region
      %s32 = ssub.s32 6144, 6144
      %33 = vsyncadd [#allocation6], %s32
      %s34 = sshll.u32 [#allocation5], 4
      %s35 = int_to_ptr.vmem [resolvable:$true] %s34
      %40 = dma.hbm_to_vmem [thread:$0]  %s4, 6144, %s35, [#allocation6], 256, 256, 16
    $region21: #{tpu_custom_call.1} parent=1 // pred_fallthru
      _
    // Predicated region
    $region22: #{tpu_custom_call.1} parent=1 // pred_check
      _
    $region23: #{tpu_custom_call.1} parent=1 // pred_check_branch
      %42 = sbr.rel (0) target = $region25
    $region24: #{tpu_custom_call.1} parent=1 // pred_region
      %43 = dma.done [#allocation3], 128
    $region25: #{tpu_custom_call.1} parent=1 // pred_fallthru
      _
    // Predicated region
    $region26: #{tpu_custom_call.1} parent=1 // pred_check
      _
    $region27: #{tpu_custom_call.1} parent=1 // pred_check_branch
      %45 = sbr.rel (0) target = $region29
    $region28: #{tpu_custom_call.1} parent=1 // pred_region
      %46 = dma.done [#allocation6], 6144
    $region29: #{tpu_custom_call.1} parent=1 // pred_fallthru
      _
    %v47 = vld [vmem:[%s0] sm:$0xff]
    %v48 = vld [vmem:[#allocation5 + $0x171] ss:$0 sm:$0xff]
    %v49 = vld [vmem:[#allocation5 + $0x172] ss:$0 sm:$0xff]
    %vm50 = vcmask 392192
    %v51 = vsel %vm50, %v47, 0.0
    %52 = vadd.xlane.f32.xlu0 %v51
    %v53 = vpop.xlane.xlu0 %52
    %v54 = vrcp.pop 48.0
    %v55 = vmul.f32 %v53, %v54
    %v56 = vsub.f32 %v47, %v55
    %v57 = vmul.f32 %v56, %v56
    %v58 = vsel %vm50, %v57, 0.0
    %59 = vadd.xlane.f32.xlu0 %v58
    %v60 = vpop.xlane.xlu0 %59
    %v61 = vmul.f32 %v60, %v54
    %v62 = vadd.f32 %v61, 1e-05
    %v63 = vrsqrt.pop %v62
    %v64 = vmul.f32 %v56, %v63
    %v65 = vmul.f32 %v64, %v48
    %v66 = vadd.f32 %v65, %v49
    %v67 = vld [vmem:[#allocation5] sm:$0xff]
    %v68 = vld [vmem:[#allocation5 + $0x10] sm:$0xff]
    %v69 = vld [vmem:[#allocation5 + $0x20] sm:$0xff]
    %v70 = vld [vmem:[#allocation5 + $0x30] sm:$0xff]
    %v71 = vld [vmem:[#allocation5 + $0x40] sm:$0xff]
    %v72 = vld [vmem:[#allocation5 + $0x50] sm:$0xff]
    %v73 = vld [vmem:[#allocation5 + $0x160] ss:$0 sm:$0xff]
    %v75 = vsel %vm50, %v66, 0
    %77 = vmatprep.subr.mxu0 0.0
    %78 = vmatpush1.msra.mxu0 %v67
    %79 = vmatprep.subr.mxu0 0.0
    %80 = vmatpush1.msra.mxu0 %v68
    %81 = vmatprep.subr.mxu0 0.0
    %82 = vmatpush1.msra.mxu0 %v69
    %83 = vmatprep.subr.mxu0 0.0
    %84 = vmatpush1.msra.mxu0 %v70
    %85 = vmatprep.subr.mxu0 0.0
    %86 = vmatpush1.msra.mxu0 %v71
    %87 = vmatprep.subr.mxu0 0.0
    %88 = vmatpush1.msra.mxu0 %v72
    %89 = vmatprep.subr.mxu0 0.0
    %90 = vmatpush1.msra.mxu0 0.0
    %91 = vmatprep.subr.mxu0 0.0
    %92 = vmatpush1.msra.mxu0 0.0
    %93 = vmatprep.subr.mxu0 0.0
    %94 = vmatpush1.msra.mxu0 0.0
    %95 = vmatprep.subr.mxu0 0.0
    %96 = vmatpush1.msra.mxu0 0.0
    %97 = vmatprep.subr.mxu0 0.0
    %98 = vmatpush1.msra.mxu0 0.0
    %99 = vmatprep.subr.mxu0 0.0
    %100 = vmatpush1.msra.mxu0 0.0
    %101 = vmatprep.subr.mxu0 0.0
    %102 = vmatpush1.msra.mxu0 0.0
    %103 = vmatprep.subr.mxu0 0.0
    %104 = vmatpush1.msra.mxu0 0.0
    %105 = vmatprep.subr.mxu0 0.0
    %106 = vmatpush1.msra.mxu0 0.0
    %107 = vmatprep.subr.mxu0 0.0
    %108 = vmatpush1.msra.mxu0 0.0
    %109 = vmatprep.subr.mxu0 0.0
    %110 = vmatpush1.msra.mxu0 0.0
    %111 = vmatprep.subr.mxu0 0.0
    %112 = vmatpush1.msra.mxu0 0.0
    %113 = vmatprep.subr.mxu0 0.0
    %114 = vmatpush1.msra.mxu0 0.0
    %115 = vmatprep.subr.mxu0 0.0
    %116 = vmatpush1.msra.mxu0 0.0
    %117 = vmatprep.subr.mxu0 0.0
    %118 = vmatpush1.msra.mxu0 0.0
    %119 = vmatprep.subr.mxu0 0.0
    %120 = vmatpush1.msra.mxu0 0.0
    %121 = vmatprep.subr.mxu0 0.0
    %122 = vmatpush1.msra.mxu0 0.0
    %123 = vmatprep.subr.mxu0 0.0
    %124 = vmatpush1.msra.mxu0 0.0
    %125 = vmatprep.subr.mxu0 0.0
    %126 = vmatpush1.msra.mxu0 0.0
    %127 = vmatprep.subr.mxu0 0.0
    %128 = vmatpush1.msra.mxu0 0.0
    %129 = vmatprep.subr.mxu0 0.0
    %130 = vmatpush1.msra.mxu0 0.0
    %131 = vmatprep.subr.mxu0 0.0
    %132 = vmatpush1.msra.mxu0 0.0
    %133 = vmatprep.subr.mxu0 0.0
    %134 = vmatpush1.msra.mxu0 0.0
    %135 = vmatprep.subr.mxu0 0.0
    %136 = vmatpush1.msra.mxu0 0.0
    %137 = vmatprep.subr.mxu0 0.0
    %138 = vmatpush1.msra.mxu0 0.0
    %139 = vmatprep.subr.mxu0 0.0
    %140 = vmatpush1.msra.mxu0 0.0
    %141 = vmatprep.mubr.f32.mxu0 0.0
    %142 = vmatmul.mubr.f32.gmra.mrb[0].mxu0 %v75
    %v143 = vpop.f32.mrb[0].mxu0
    %v144 = vadd.f32 %v73, %v143
    %v145 = vpop.f32.mrb[0].mxu0
    %146 = vdwg.mxu0
    %v147 = vmax.f32 %v144, 0.0
    %v148 = vld [vmem:[#allocation5 + $0x163] ss:$0 sm:$0xff]
    %v149 = vld [vmem:[#allocation5 + $0x164] ss:$0 sm:$0xff]
    %vm150 = vcmask 261120
    %v151 = vsel %vm150, %v147, 0.0
    %152 = vadd.xlane.f32.xlu0 %v151
    %v153 = vpop.xlane.xlu0 %152
    %v154 = vrcp.pop 32.0
    %v155 = vmul.f32 %v153, %v154
    %v156 = vsub.f32 %v147, %v155
    %v157 = vmul.f32 %v156, %v156
    %v158 = vsel %vm150, %v157, 0.0
    %159 = vadd.xlane.f32.xlu0 %v158
    %v160 = vpop.xlane.xlu0 %159
    %v161 = vmul.f32 %v160, %v154
    %v162 = vadd.f32 %v161, 1e-05
    %v163 = vrsqrt.pop %v162
    %v164 = vmul.f32 %v156, %v163
    %v165 = vmul.f32 %v164, %v148
    %v166 = vadd.f32 %v165, %v149
    %v167 = vld [vmem:[#allocation5 + $0x60] sm:$0xff]
    %v168 = vld [vmem:[#allocation5 + $0x70] sm:$0xff]
    %v169 = vld [vmem:[#allocation5 + $0x80] sm:$0xff]
    %v170 = vld [vmem:[#allocation5 + $0x90] sm:$0xff]
    %v171 = vld [vmem:[#allocation5 + $0x161] ss:$0 sm:$0xff]
    %v173 = vsel %vm150, %v166, 0
    %175 = vmatprep.subr.mxu0 0.0
    %176 = vmatpush1.msra.mxu0 %v167
    %177 = vmatprep.subr.mxu0 0.0
    %178 = vmatpush1.msra.mxu0 %v168
    %179 = vmatprep.subr.mxu0 0.0
    %180 = vmatpush1.msra.mxu0 %v169
    %181 = vmatprep.subr.mxu0 0.0
    %182 = vmatpush1.msra.mxu0 %v170
    %183 = vmatprep.subr.mxu0 0.0
    %184 = vmatpush1.msra.mxu0 0.0
    %185 = vmatprep.subr.mxu0 0.0
    %186 = vmatpush1.msra.mxu0 0.0
    %187 = vmatprep.subr.mxu0 0.0
    %188 = vmatpush1.msra.mxu0 0.0
    %189 = vmatprep.subr.mxu0 0.0
    %190 = vmatpush1.msra.mxu0 0.0
    %191 = vmatprep.subr.mxu0 0.0
    %192 = vmatpush1.msra.mxu0 0.0
    %193 = vmatprep.subr.mxu0 0.0
    %194 = vmatpush1.msra.mxu0 0.0
    %195 = vmatprep.subr.mxu0 0.0
    %196 = vmatpush1.msra.mxu0 0.0
    %197 = vmatprep.subr.mxu0 0.0
    %198 = vmatpush1.msra.mxu0 0.0
    %199 = vmatprep.subr.mxu0 0.0
    %200 = vmatpush1.msra.mxu0 0.0
    %201 = vmatprep.subr.mxu0 0.0
    %202 = vmatpush1.msra.mxu0 0.0
    %203 = vmatprep.subr.mxu0 0.0
    %204 = vmatpush1.msra.mxu0 0.0
    %205 = vmatprep.subr.mxu0 0.0
    %206 = vmatpush1.msra.mxu0 0.0
    %207 = vmatprep.subr.mxu0 0.0
    %208 = vmatpush1.msra.mxu0 0.0
    %209 = vmatprep.subr.mxu0 0.0
    %210 = vmatpush1.msra.mxu0 0.0
    %211 = vmatprep.subr.mxu0 0.0
    %212 = vmatpush1.msra.mxu0 0.0
    %213 = vmatprep.subr.mxu0 0.0
    %214 = vmatpush1.msra.mxu0 0.0
    %215 = vmatprep.subr.mxu0 0.0
    %216 = vmatpush1.msra.mxu0 0.0
    %217 = vmatprep.subr.mxu0 0.0
    %218 = vmatpush1.msra.mxu0 0.0
    %219 = vmatprep.subr.mxu0 0.0
    %220 = vmatpush1.msra.mxu0 0.0
    %221 = vmatprep.subr.mxu0 0.0
    %222 = vmatpush1.msra.mxu0 0.0
    %223 = vmatprep.subr.mxu0 0.0
    %224 = vmatpush1.msra.mxu0 0.0
    %225 = vmatprep.subr.mxu0 0.0
    %226 = vmatpush1.msra.mxu0 0.0
    %227 = vmatprep.subr.mxu0 0.0
    %228 = vmatpush1.msra.mxu0 0.0
    %229 = vmatprep.subr.mxu0 0.0
    %230 = vmatpush1.msra.mxu0 0.0
    %231 = vmatprep.subr.mxu0 0.0
    %232 = vmatpush1.msra.mxu0 0.0
    %233 = vmatprep.subr.mxu0 0.0
    %234 = vmatpush1.msra.mxu0 0.0
    %235 = vmatprep.subr.mxu0 0.0
    %236 = vmatpush1.msra.mxu0 0.0
    %237 = vmatprep.subr.mxu0 0.0
    %238 = vmatpush1.msra.mxu0 0.0
    %239 = vmatprep.mubr.f32.mxu0 0.0
    %240 = vmatmul.mubr.f32.gmra.mrb[0].mxu0 %v173
    %v241 = vpop.f32.mrb[0].mxu0
    %v242 = vadd.f32 %v171, %v241
    %v243 = vpop.f32.mrb[0].mxu0
    %244 = vdwg.mxu0
    %v245 = vmax.f32 %v242, 0.0
    %v246 = vld [vmem:[#allocation5 + $0x165] ss:$0 sm:$0xff]
    %v247 = vld [vmem:[#allocation5 + $0x166] ss:$0 sm:$0xff]
    %v248 = vsel %vm150, %v245, 0.0
    %249 = vadd.xlane.f32.xlu0 %v248
    %v250 = vpop.xlane.xlu0 %249
    %v251 = vmul.f32 %v250, %v154
    %v252 = vsub.f32 %v245, %v251
    %v253 = vmul.f32 %v252, %v252
    %v254 = vsel %vm150, %v253, 0.0
    %255 = vadd.xlane.f32.xlu0 %v254
    %v256 = vpop.xlane.xlu0 %255
    %v257 = vmul.f32 %v256, %v154
    %v258 = vadd.f32 %v257, 1e-05
    %v259 = vrsqrt.pop %v258
    %v260 = vmul.f32 %v252, %v259
    %v261 = vmul.f32 %v260, %v246
    %v262 = vadd.f32 %v261, %v247
    %v263 = vld [vmem:[#allocation2] sm:$0xff]
    %v264 = vld [vmem:[%s2] sm:$0xff]
    %266 = vset.pattern.permute.xlu0 0
    %267 = vperm.xlu0 %266, %v264
    %v268 = vpop.permute.xlu0 %267
    %v270 = vmul.f32 %v263, %v268
    %v271 = vld [vmem:[#allocation5 + $0xa0] sm:$0xff]
    %v272 = vld [vmem:[#allocation5 + $0xa8] sm:$0xff]
    %v273 = vld [vmem:[#allocation5 + $0xb0] sm:$0xff]
    %v274 = vld [vmem:[#allocation5 + $0xb8] sm:$0xff]
    %v275 = vld [vmem:[#allocation5 + $0xc0] sm:$0xff]
    %v276 = vld [vmem:[#allocation5 + $0xc8] sm:$0xff]
    %v277 = vld [vmem:[#allocation5 + $0xd0] sm:$0xff]
    %v278 = vld [vmem:[#allocation5 + $0xd8] sm:$0xff]
    %v279 = vld [vmem:[#allocation5 + $0xe0] sm:$0xff]
    %v280 = vld [vmem:[#allocation5 + $0xe8] sm:$0xff]
    %v281 = vld [vmem:[#allocation5 + $0xf0] sm:$0xff]
    %v282 = vld [vmem:[#allocation5 + $0xf8] sm:$0xff]
    %v283 = vld [vmem:[#allocation5 + $0x100] sm:$0xff]
    %v284 = vld [vmem:[#allocation5 + $0x108] sm:$0xff]
    %v285 = vld [vmem:[#allocation5 + $0x110] sm:$0xff]
    %v286 = vld [vmem:[#allocation5 + $0x118] sm:$0xff]
    %288 = vrot.lane.b32.xlu0 %v270, 32
    %v289 = vpop.permute.xlu0 %288
    %v291 = vsel %vm150, %v262, %v289
    %s292 = scalar_lea.vmem [#allocation5], 354
    %v293 = vld [vmem:[%s292] ss:$8 sm:$0x3]
    %v295 = vlaneseq
    %v296 = vshrl.u32 %v295, 7
    %v297 = vsub.s32 0, %v296
    %v298 = vrot.slane %v293, %v297
    %v299 = vlaneseq
    %v300 = vshrl.u32 %v299, 7
    %v301 = vsub.s32 1, %v300
    %v302 = vrot.slane %v293, %v301
    %vm305 = vcmask 523264
    %v307 = vsel %vm305, %v291, 0
    %309 = vmatprep.subr.mxu0 %v272
    %310 = vmatpush1.msra.mxu0 %v271
    %311 = vmatprep.subr.mxu0 %v274
    %312 = vmatpush1.msra.mxu0 %v273
    %313 = vmatprep.subr.mxu0 %v276
    %314 = vmatpush1.msra.mxu0 %v275
    %315 = vmatprep.subr.mxu0 %v278
    %316 = vmatpush1.msra.mxu0 %v277
    %317 = vmatprep.subr.mxu0 %v280
    %318 = vmatpush1.msra.mxu0 %v279
    %319 = vmatprep.subr.mxu0 %v282
    %320 = vmatpush1.msra.mxu0 %v281
    %321 = vmatprep.subr.mxu0 %v284
    %322 = vmatpush1.msra.mxu0 %v283
    %323 = vmatprep.subr.mxu0 %v286
    %324 = vmatpush1.msra.mxu0 %v285
    %325 = vmatprep.subr.mxu0 0.0
    %326 = vmatpush1.msra.mxu0 0.0
    %327 = vmatprep.subr.mxu0 0.0
    %328 = vmatpush1.msra.mxu0 0.0
    %329 = vmatprep.subr.mxu0 0.0
    %330 = vmatpush1.msra.mxu0 0.0
    %331 = vmatprep.subr.mxu0 0.0
    %332 = vmatpush1.msra.mxu0 0.0
    %333 = vmatprep.subr.mxu0 0.0
    %334 = vmatpush1.msra.mxu0 0.0
    %335 = vmatprep.subr.mxu0 0.0
    %336 = vmatpush1.msra.mxu0 0.0
    %337 = vmatprep.subr.mxu0 0.0
    %338 = vmatpush1.msra.mxu0 0.0
    %339 = vmatprep.subr.mxu0 0.0
    %340 = vmatpush1.msra.mxu0 0.0
    %341 = vmatprep.subr.mxu0 0.0
    %342 = vmatpush1.msra.mxu0 0.0
    %343 = vmatprep.subr.mxu0 0.0
    %344 = vmatpush1.msra.mxu0 0.0
    %345 = vmatprep.subr.mxu0 0.0
    %346 = vmatpush1.msra.mxu0 0.0
    %347 = vmatprep.subr.mxu0 0.0
    %348 = vmatpush1.msra.mxu0 0.0
    %349 = vmatprep.subr.mxu0 0.0
    %350 = vmatpush1.msra.mxu0 0.0
    %351 = vmatprep.subr.mxu0 0.0
    %352 = vmatpush1.msra.mxu0 0.0
    %353 = vmatprep.subr.mxu0 0.0
    %354 = vmatpush1.msra.mxu0 0.0
    %355 = vmatprep.subr.mxu0 0.0
    %356 = vmatpush1.msra.mxu0 0.0
    %357 = vmatprep.subr.mxu0 0.0
    %358 = vmatpush1.msra.mxu0 0.0
    %359 = vmatprep.subr.mxu0 0.0
    %360 = vmatpush1.msra.mxu0 0.0
    %361 = vmatprep.subr.mxu0 0.0
    %362 = vmatpush1.msra.mxu0 0.0
    %363 = vmatprep.subr.mxu0 0.0
    %364 = vmatpush1.msra.mxu0 0.0
    %365 = vmatprep.subr.mxu0 0.0
    %366 = vmatpush1.msra.mxu0 0.0
    %367 = vmatprep.subr.mxu0 0.0
    %368 = vmatpush1.msra.mxu0 0.0
    %369 = vmatprep.subr.mxu0 0.0
    %370 = vmatpush1.msra.mxu0 0.0
    %371 = vmatprep.subr.mxu0 0.0
    %372 = vmatpush1.msra.mxu0 0.0
    %373 = vmatprep.mubr.f32.mxu0 0.0
    %374 = vmatmul.mubr.f32.gmra.mrb[0].mxu0 %v307
    %v375 = vpop.f32.mrb[0].mxu0
    %v376 = vadd.f32 %v298, %v375
    %v377 = vpop.f32.mrb[0].mxu0
    %v378 = vadd.f32 %v302, %v377
    %379 = vdwg.mxu0
    %381 = vrot.lane.b32.xlu0 %v376, 32
    %v382 = vpop.permute.xlu0 %381
    %v384 = vadd.f32 %v376, %v382
    %v385 = vxor.u32 %v384, 2147483648
    %v386 = vmul.f32 %v385, 1.442695
    %v387 = vpow.pop %v386
    %v388 = vadd.f32 %v387, 1.0
    %v389 = vrcp.pop %v388
    %v390 = vmul.f32 1.0, %v389
    %392 = vrot.lane.b32.xlu0 %v378, 32
    %v393 = vpop.permute.xlu0 %392
    %v395 = vadd.f32 %v376, %v393
    %v396 = vxor.u32 %v395, 2147483648
    %v397 = vmul.f32 %v396, 1.442695
    %v398 = vpow.pop %v397
    %v399 = vadd.f32 %v398, 1.0
    %v400 = vrcp.pop %v399
    %v401 = vmul.f32 1.0, %v400
    %402 = vrot.lane.b32.xlu0 %v378, 96
    %v403 = vpop.permute.xlu0 %402
    %v405 = vmul.f32 %v390, %v403
    %407 = vrot.lane.b32.xlu0 %v405, 64
    %v408 = vpop.permute.xlu0 %407
    %v410 = vadd.f32 %v376, %v408
    %v411 = vtanh.pop %v410
    %v412 = vsub.f32 1.0, %v401
    %414 = vrot.lane.b32.xlu0 %v411, 96
    %v415 = vpop.permute.xlu0 %414
    %v417 = vmul.f32 %v412, %v415
    %v418 = vmul.f32 %v401, %v289
    %v419 = vadd.f32 %v417, %v418
    %v420 = vld [vmem:[#allocation5 + $0x167] ss:$0 sm:$0xff]
    %v421 = vld [vmem:[#allocation5 + $0x170] ss:$0 sm:$0xff]
    %423 = vrot.lane.b32.xlu0 %v419, 96
    %v424 = vpop.permute.xlu0 %423
    %v426 = vsel %vm150, %v424, 0.0
    %427 = vadd.xlane.f32.xlu0 %v426
    %v428 = vpop.xlane.xlu0 %427
    %v429 = vmul.f32 %v428, %v154
    %v430 = vsub.f32 %v419, %v429
    %v431 = vmul.f32 %v430, %v430
    %433 = vrot.lane.b32.xlu0 %v431, 96
    %v434 = vpop.permute.xlu0 %433
    %v436 = vsel %vm150, %v434, 0.0
    %437 = vadd.xlane.f32.xlu0 %v436
    %v438 = vpop.xlane.xlu0 %437
    %v439 = vmul.f32 %v438, %v154
    %v440 = vadd.f32 %v439, 1e-05
    %v441 = vrsqrt.pop %v440
    %v442 = vmul.f32 %v430, %v441
    %444 = vrot.lane.b32.xlu0 %v420, 32
    %v445 = vpop.permute.xlu0 %444
    %v447 = vmul.f32 %v442, %v445
    %449 = vrot.lane.b32.xlu0 %v421, 32
    %v450 = vpop.permute.xlu0 %449
    %v452 = vadd.f32 %v447, %v450
    %v453 = vld [vmem:[#allocation5 + $0x120] sm:$0xff]
    %v454 = vld [vmem:[#allocation5 + $0x130] sm:$0xff]
    %v455 = vld [vmem:[#allocation5 + $0x140] sm:$0xff]
    %v456 = vld [vmem:[#allocation5 + $0x150] sm:$0xff]
    %v457 = vld [vmem:[#allocation5 + $0x173] ss:$0 sm:$0xff]
    %459 = vrot.lane.b32.xlu0 %v452, 96
    %v460 = vpop.permute.xlu0 %459
    %v461 = vsel %vm150, %v460, 0
    %463 = vmatprep.subr.mxu0 0.0
    %464 = vmatpush1.msra.mxu0 %v453
    %465 = vmatprep.subr.mxu0 0.0
    %466 = vmatpush1.msra.mxu0 %v454
    %467 = vmatprep.subr.mxu0 0.0
    %468 = vmatpush1.msra.mxu0 %v455
    %469 = vmatprep.subr.mxu0 0.0
    %470 = vmatpush1.msra.mxu0 %v456
    %471 = vmatprep.subr.mxu0 0.0
    %472 = vmatpush1.msra.mxu0 0.0
    %473 = vmatprep.subr.mxu0 0.0
    %474 = vmatpush1.msra.mxu0 0.0
    %475 = vmatprep.subr.mxu0 0.0
    %476 = vmatpush1.msra.mxu0 0.0
    %477 = vmatprep.subr.mxu0 0.0
    %478 = vmatpush1.msra.mxu0 0.0
    %479 = vmatprep.subr.mxu0 0.0
    %480 = vmatpush1.msra.mxu0 0.0
    %481 = vmatprep.subr.mxu0 0.0
    %482 = vmatpush1.msra.mxu0 0.0
    %483 = vmatprep.subr.mxu0 0.0
    %484 = vmatpush1.msra.mxu0 0.0
    %485 = vmatprep.subr.mxu0 0.0
    %486 = vmatpush1.msra.mxu0 0.0
    %487 = vmatprep.subr.mxu0 0.0
    %488 = vmatpush1.msra.mxu0 0.0
    %489 = vmatprep.subr.mxu0 0.0
    %490 = vmatpush1.msra.mxu0 0.0
    %491 = vmatprep.subr.mxu0 0.0
    %492 = vmatpush1.msra.mxu0 0.0
    %493 = vmatprep.subr.mxu0 0.0
    %494 = vmatpush1.msra.mxu0 0.0
    %495 = vmatprep.subr.mxu0 0.0
    %496 = vmatpush1.msra.mxu0 0.0
    %497 = vmatprep.subr.mxu0 0.0
    %498 = vmatpush1.msra.mxu0 0.0
    %499 = vmatprep.subr.mxu0 0.0
    %500 = vmatpush1.msra.mxu0 0.0
    %501 = vmatprep.subr.mxu0 0.0
    %502 = vmatpush1.msra.mxu0 0.0
    %503 = vmatprep.subr.mxu0 0.0
    %504 = vmatpush1.msra.mxu0 0.0
    %505 = vmatprep.subr.mxu0 0.0
    %506 = vmatpush1.msra.mxu0 0.0
    %507 = vmatprep.subr.mxu0 0.0
    %508 = vmatpush1.msra.mxu0 0.0
    %509 = vmatprep.subr.mxu0 0.0
    %510 = vmatpush1.msra.mxu0 0.0
    %511 = vmatprep.subr.mxu0 0.0
    %512 = vmatpush1.msra.mxu0 0.0
    %513 = vmatprep.subr.mxu0 0.0
    %514 = vmatpush1.msra.mxu0 0.0
    %515 = vmatprep.subr.mxu0 0.0
    %516 = vmatpush1.msra.mxu0 0.0
    %517 = vmatprep.subr.mxu0 0.0
    %518 = vmatpush1.msra.mxu0 0.0
    %519 = vmatprep.subr.mxu0 0.0
    %520 = vmatpush1.msra.mxu0 0.0
    %521 = vmatprep.subr.mxu0 0.0
    %522 = vmatpush1.msra.mxu0 0.0
    %523 = vmatprep.subr.mxu0 0.0
    %524 = vmatpush1.msra.mxu0 0.0
    %525 = vmatprep.subr.mxu0 0.0
    %526 = vmatpush1.msra.mxu0 0.0
    %527 = vmatprep.mubr.f32.mxu0 0.0
    %528 = vmatmul.mubr.f32.gmra.mrb[0].mxu0 %v461
    %v529 = vpop.f32.mrb[0].mxu0
    %v530 = vadd.f32 %v457, %v529
    %v531 = vpop.f32.mrb[0].mxu0
    %532 = vdwg.mxu0
    %v533 = vld [vmem:[%s3] sm:$0xff]
    %vm534 = vcmp.eq.f32.partialorder %v533, 0.0
    %v535 = vsel %vm534, -1e+10, %v530
    %vm536 = vcmask 130048
    %v537 = vsel %vm536, %v535, -inf
    %538 = vmax.xlane.f32.xlu0 %v537
    %v539 = vpop.xlane.xlu0 %538
    %vm540 = vcmp.eq.f32.partialorder %v535, %v539
    %v541 = vsel %vm540, 1, 0
    %v542 = vcvt.s32.f32 %v541
    %544 = vrot.lane.b32.xlu0 %v542, 32
    %v545 = vpop.permute.xlu0 %544
    %v547 = vsel %vm150, %v424, %v545
    %v548 = vsel %vm50, %v547, 0.0
    %549 = vst [vmem:[#allocation7] sm:$0xff] %v548
    // Predicated region
    $region30: #{tpu_custom_call.1} parent=1 // pred_check
      _
    $region31: #{tpu_custom_call.1} parent=1 // pred_check_branch
      %551 = sbr.rel (0) target = $region33
    $region32: #{tpu_custom_call.1} parent=1 // pred_region
      %s553 = ssub.s32 128, 128
      %554 = vsyncadd [#allocation4], %s553
      %s556 = sshll.u32 [#allocation7], 4
      %s557 = int_to_ptr.vmem [resolvable:$true] %s556
      %559 = dma.vmem_to_hbm [thread:$0]  %s557, 128, %s5, [#allocation4]
    $region33: #{tpu_custom_call.1} parent=1 // pred_fallthru
      _
    // Predicated region
    $region34: #{tpu_custom_call.1} parent=1 // pred_check
      _
    $region35: #{tpu_custom_call.1} parent=1 // pred_check_branch
      %561 = sbr.rel (0) target = $region37
    $region36: #{tpu_custom_call.1} parent=1 // pred_region
      %562 = dma.done [#allocation4], 128
    $region37: #{tpu_custom_call.1} parent=1 // pred_fallthru
      _
    %563 = vsyncpa [#allocation3], 1
    %564 = vsyncpa [#allocation6], 1
    %565 = vsyncpa [#allocation4], 1

</llo_original>
